<compile_context>
chip_gen: v6e
topology: v6e:2x2x1
jax: 0.10.0
libtpu: 0.0.40
codegen_flags: <defaults>
</compile_context>

<pallas_src>
import jax
import jax.numpy as jnp
from jax.experimental import pallas as pl
from jax.experimental.pallas import tpu as pltpu


def _hdc_kernel(x_ref, w1_ref, b1_ref, w2_ref, b2_ref,
                w3x_ref, w3f_ref, b3_ref, w4_ref, b4_ref, out_ref):
    # x and weights arrive as bf16; all accumulation / elementwise math is f32.
    x = x_ref[...]

    # family_classifier: Linear -> ReLU -> (Dropout: identity) -> Linear
    h1 = jnp.dot(x, w1_ref[...], preferred_element_type=jnp.float32) + b1_ref[...]
    h1 = jnp.maximum(h1, 0.0)
    fam_logits = (jnp.dot(h1.astype(jnp.bfloat16), w2_ref[...],
                          preferred_element_type=jnp.float32) + b2_ref[...])

    # softmax over last dim (f32 math, EUP reciprocal)
    fam_logits = fam_logits - jnp.max(fam_logits, axis=-1, keepdims=True)
    e = jnp.exp(fam_logits)
    fam_probs = e * pl.reciprocal(jnp.sum(e, axis=-1, keepdims=True), approx=True)

    # subfamily_classifier on concat([x, fam_probs]) via split weight matmuls
    h2 = (jnp.dot(x, w3x_ref[...], preferred_element_type=jnp.float32)
          + jnp.dot(fam_probs.astype(jnp.bfloat16), w3f_ref[...],
                    preferred_element_type=jnp.float32)
          + b3_ref[...])
    h2 = jnp.maximum(h2, 0.0)

    # final Linear into the lane-dense (padded-to-128) output block
    out = (jnp.dot(h2.astype(jnp.bfloat16), w4_ref[...],
                   preferred_element_type=jnp.float32) + b4_ref[...])
    out_ref[...] = out.astype(out_ref.dtype)


def _round_up(n, m):
    return -(-n // m) * m


def hierarchical_domain_classifier(x, params, *, tile_b=None):
    """x: (B, D) float32.

    params: dict with weights stored transposed vs PyTorch, i.e. (in, out),
    and biases as (1, out). w3 is pre-split into w3x (D, H) / w3f (F, H).
    """
    B, D = x.shape
    H = params["w1"].shape[1]            # input_dim // 2
    F = params["w2"].shape[1]            # num_classes // 10
    C = params["w4"].shape[1]            # num_classes

    # Lane-dense output: pad C up to a multiple of 128.
    C_pad = _round_up(max(C, 128), 128)

    # Explicit batch tile: multiple of 8 (sublane), capped so big batches get
    # multiple "parallel" grid steps and VMEM per step stays small.
    if tile_b is None:
        tile_b = min(_round_up(B, 8), 1024)
    assert tile_b % 8 == 0, "tile_b must be a multiple of 8 (f32 sublane)"
    B_pad = _round_up(B, tile_b)

    # Pad batch (zeros) and the final-layer weight/bias out to C_pad.
    x_p = x if B_pad == B else jnp.pad(x, ((0, B_pad - B), (0, 0)))
    w4_p = jnp.pad(params["w4"], ((0, 0), (0, C_pad - C)))
    b4_p = jnp.pad(params["b4"], ((0, 0), (0, C_pad - C)))

    # bf16 for matmul operands only; biases stay f32 (added to f32 accum).
    bf = lambda a: a.astype(jnp.bfloat16)
    x_bf = bf(x_p)

    full = lambda shape: pl.BlockSpec(shape, lambda i: (0, 0))

    out = pl.pallas_call(
        _hdc_kernel,
        out_shape=jax.ShapeDtypeStruct((B_pad, C_pad), jnp.float32),
        grid_spec=pltpu.PrefetchScalarGridSpec(
            num_scalar_prefetch=0,
            grid=(B_pad // tile_b,),
            in_specs=[
                pl.BlockSpec((tile_b, D), lambda i: (i, 0)),   # x (bf16)
                full((D, H)),                                   # w1 (bf16)
                full((1, H)),                                   # b1 (f32)
                full((H, F)),                                   # w2 (bf16)
                full((1, F)),                                   # b2 (f32)
                full((D, H)),                                   # w3 x-part (bf16)
                full((F, H)),                                   # w3 prob-part (bf16)
                full((1, H)),                                   # b3 (f32)
                full((H, C_pad)),                               # w4 padded (bf16)
                full((1, C_pad)),                               # b4 padded (f32)
            ],
            out_specs=pl.BlockSpec((tile_b, C_pad), lambda i: (i, 0)),
        ),
        compiler_params=pltpu.CompilerParams(
            dimension_semantics=("parallel",)),
    )(x_bf, bf(params["w1"]), params["b1"], bf(params["w2"]), params["b2"],
      bf(params["w3x"]), bf(params["w3f"]), params["b3"], bf(w4_p), b4_p)

    return out[:B, :C]


def _reference(x, p):
    h1 = jnp.maximum(x @ p["w1"] + p["b1"], 0.0)
    fam = h1 @ p["w2"] + p["b2"]
    probs = jax.nn.softmax(fam, axis=-1)
    h2 = jnp.maximum(x @ p["w3x"] + probs @ p["w3f"] + p["b3"], 0.0)
    return h2 @ p["w4"] + p["b4"]


def _init_params(key, input_dim, num_classes):
    H = input_dim // 2
    F = num_classes // 10
    D = input_dim
    C = num_classes
    ks = jax.random.split(key, 8)
    scale = 0.1
    return {
        "w1": scale * jax.random.normal(ks[0], (D, H), jnp.float32),
        "b1": scale * jax.random.normal(ks[1], (1, H), jnp.float32),
        "w2": scale * jax.random.normal(ks[2], (H, F), jnp.float32),
        "b2": scale * jax.random.normal(ks[3], (1, F), jnp.float32),
        # subfamily first linear weight (D+F, H) pre-split into x / prob parts
        "w3x": scale * jax.random.normal(ks[4], (D, H), jnp.float32),
        "w3f": scale * jax.random.normal(ks[5], (F, H), jnp.float32),
        "b3": scale * jax.random.normal(ks[6], (1, H), jnp.float32),
        "w4": scale * jax.random.normal(ks[7], (H, C), jnp.float32),
        "b4": jnp.zeros((1, C), jnp.float32),
    }


if __name__ == "__main__":
    key = jax.random.PRNGKey(0)
    B, input_dim, num_classes = 8, 32, 40   # family classes = 4, hidden = 16

    kx, kp = jax.random.split(key)
    x = jax.random.normal(kx, (B, input_dim), jnp.float32)
    params = _init_params(kp, input_dim, num_classes)

    out = hierarchical_domain_classifier(x, params)
    out = jax.block_until_ready(out)

    ref = _reference(x, params)
    assert out.shape == (B, num_classes)
    # bf16 matmul operands + approx reciprocal => loosened tolerance vs f32 ref
    assert jnp.allclose(out, ref, atol=2e-2, rtol=2e-2), (
        float(jnp.max(jnp.abs(out - ref))))

    print("KERNEL_OK")
</pallas_src>

<mosaic_0001>
module attributes {stable_mosaic.version = 11 : i64} {
  func.func @_hdc_kernel(%arg0: i32, %arg1: memref<8x32xbf16, #tpu.memory_space<vmem>>, %arg2: memref<32x16xbf16, #tpu.memory_space<vmem>>, %arg3: memref<1x16xf32, #tpu.memory_space<vmem>>, %arg4: memref<16x4xbf16, #tpu.memory_space<vmem>>, %arg5: memref<1x4xf32, #tpu.memory_space<vmem>>, %arg6: memref<32x16xbf16, #tpu.memory_space<vmem>>, %arg7: memref<4x16xbf16, #tpu.memory_space<vmem>>, %arg8: memref<1x16xf32, #tpu.memory_space<vmem>>, %arg9: memref<16x128xbf16, #tpu.memory_space<vmem>>, %arg10: memref<1x128xf32, #tpu.memory_space<vmem>>, %arg11: memref<8x128xf32, #tpu.memory_space<vmem>>) attributes {dimension_semantics = [#tpu.dimension_semantics<parallel>], iteration_bounds = array<i64: 1>, scalar_prefetch = 0 : i64, scratch_operands = 0 : i64, tpu.core_type = #tpu.core_type<tc>, window_params = [{transform_indices = @transform_0, window_bounds = array<i64: 8, 32>}, {pipeline_mode = #tpu.pipeline_mode<synchronous>, transform_indices = @transform_1, window_bounds = array<i64: 32, 16>}, {pipeline_mode = #tpu.pipeline_mode<synchronous>, transform_indices = @transform_2, window_bounds = array<i64: 1, 16>}, {pipeline_mode = #tpu.pipeline_mode<synchronous>, transform_indices = @transform_3, window_bounds = array<i64: 16, 4>}, {pipeline_mode = #tpu.pipeline_mode<synchronous>, transform_indices = @transform_4, window_bounds = array<i64: 1, 4>}, {pipeline_mode = #tpu.pipeline_mode<synchronous>, transform_indices = @transform_5, window_bounds = array<i64: 32, 16>}, {pipeline_mode = #tpu.pipeline_mode<synchronous>, transform_indices = @transform_6, window_bounds = array<i64: 4, 16>}, {pipeline_mode = #tpu.pipeline_mode<synchronous>, transform_indices = @transform_7, window_bounds = array<i64: 1, 16>}, {pipeline_mode = #tpu.pipeline_mode<synchronous>, transform_indices = @transform_8, window_bounds = array<i64: 16, 128>}, {pipeline_mode = #tpu.pipeline_mode<synchronous>, transform_indices = @transform_9, window_bounds = array<i64: 1, 128>}, {transform_indices = @transform_10, window_bounds = array<i64: 8, 128>}]} {
    %c0 = arith.constant 0 : index
    %c0_0 = arith.constant 0 : index
    %0 = vector.load %arg1[%c0, %c0_0] : memref<8x32xbf16, #tpu.memory_space<vmem>>, vector<8x32xbf16>
    %c0_1 = arith.constant 0 : index
    %c0_2 = arith.constant 0 : index
    %1 = vector.load %arg2[%c0_1, %c0_2] : memref<32x16xbf16, #tpu.memory_space<vmem>>, vector<32x16xbf16>
    %cst = arith.constant dense<0.000000e+00> : vector<8x16xf32>
    %2 = tpu.matmul %0, %1, %cst {dimension_numbers = #tpu.dot_dimension_numbers<[1], [0], [0], [1], [0, 0, 1, 1], [], []>} : vector<8x32xbf16>, vector<32x16xbf16>, vector<8x16xf32> -> vector<8x16xf32>
    %c0_3 = arith.constant 0 : index
    %c0_4 = arith.constant 0 : index
    %3 = vector.load %arg3[%c0_3, %c0_4] : memref<1x16xf32, #tpu.memory_space<vmem>>, vector<1x16xf32>
    %4 = vector.broadcast %3 : vector<1x16xf32> to vector<8x16xf32>
    %5 = arith.addf %2, %4 : vector<8x16xf32>
    %cst_5 = arith.constant 0.000000e+00 : f32
    %6 = vector.broadcast %cst_5 : f32 to vector<8x16xf32>
    %7 = arith.maximumf %5, %6 : vector<8x16xf32>
    %8 = arith.truncf %7 : vector<8x16xf32> to vector<8x16xbf16>
    %c0_6 = arith.constant 0 : index
    %c0_7 = arith.constant 0 : index
    %9 = vector.load %arg4[%c0_6, %c0_7] : memref<16x4xbf16, #tpu.memory_space<vmem>>, vector<16x4xbf16>
    %cst_8 = arith.constant dense<0.000000e+00> : vector<8x4xf32>
    %10 = tpu.matmul %8, %9, %cst_8 {dimension_numbers = #tpu.dot_dimension_numbers<[1], [0], [0], [1], [0, 0, 1, 1], [], []>} : vector<8x16xbf16>, vector<16x4xbf16>, vector<8x4xf32> -> vector<8x4xf32>
    %c0_9 = arith.constant 0 : index
    %c0_10 = arith.constant 0 : index
    %11 = vector.load %arg5[%c0_9, %c0_10] : memref<1x4xf32, #tpu.memory_space<vmem>>, vector<1x4xf32>
    %12 = vector.broadcast %11 : vector<1x4xf32> to vector<8x4xf32>
    %13 = arith.addf %10, %12 : vector<8x4xf32>
    %cst_11 = arith.constant dense<0xFF800000> : vector<8xf32>
    %14 = vector.multi_reduction <maximumf>, %13, %cst_11 [1] : vector<8x4xf32> to vector<8xf32>
    %15 = vector.shape_cast %14 : vector<8xf32> to vector<8x1xf32>
    %16 = vector.broadcast %15 : vector<8x1xf32> to vector<8x4xf32>
    %17 = arith.subf %13, %16 : vector<8x4xf32>
    %18 = math.exp %17 : vector<8x4xf32>
    %cst_12 = arith.constant dense<0.000000e+00> : vector<8xf32>
    %19 = vector.multi_reduction <add>, %18, %cst_12 [1] : vector<8x4xf32> to vector<8xf32>
    %20 = vector.shape_cast %19 : vector<8xf32> to vector<8x1xf32>
    %21 = tpu.reciprocal %20 {approx = true} : vector<8x1xf32> -> vector<8x1xf32>
    %22 = vector.broadcast %21 : vector<8x1xf32> to vector<8x4xf32>
    %23 = arith.mulf %18, %22 : vector<8x4xf32>
    %c0_13 = arith.constant 0 : index
    %c0_14 = arith.constant 0 : index
    %24 = vector.load %arg6[%c0_13, %c0_14] : memref<32x16xbf16, #tpu.memory_space<vmem>>, vector<32x16xbf16>
    %cst_15 = arith.constant dense<0.000000e+00> : vector<8x16xf32>
    %25 = tpu.matmul %0, %24, %cst_15 {dimension_numbers = #tpu.dot_dimension_numbers<[1], [0], [0], [1], [0, 0, 1, 1], [], []>} : vector<8x32xbf16>, vector<32x16xbf16>, vector<8x16xf32> -> vector<8x16xf32>
    %26 = arith.truncf %23 : vector<8x4xf32> to vector<8x4xbf16>
    %c0_16 = arith.constant 0 : index
    %c0_17 = arith.constant 0 : index
    %27 = vector.load %arg7[%c0_16, %c0_17] : memref<4x16xbf16, #tpu.memory_space<vmem>>, vector<4x16xbf16>
    %cst_18 = arith.constant dense<0.000000e+00> : vector<8x16xf32>
    %28 = tpu.matmul %26, %27, %cst_18 {dimension_numbers = #tpu.dot_dimension_numbers<[1], [0], [0], [1], [0, 0, 1, 1], [], []>} : vector<8x4xbf16>, vector<4x16xbf16>, vector<8x16xf32> -> vector<8x16xf32>
    %29 = arith.addf %25, %28 : vector<8x16xf32>
    %c0_19 = arith.constant 0 : index
    %c0_20 = arith.constant 0 : index
    %30 = vector.load %arg8[%c0_19, %c0_20] : memref<1x16xf32, #tpu.memory_space<vmem>>, vector<1x16xf32>
    %31 = vector.broadcast %30 : vector<1x16xf32> to vector<8x16xf32>
    %32 = arith.addf %29, %31 : vector<8x16xf32>
    %cst_21 = arith.constant 0.000000e+00 : f32
    %33 = vector.broadcast %cst_21 : f32 to vector<8x16xf32>
    %34 = arith.maximumf %32, %33 : vector<8x16xf32>
    %35 = arith.truncf %34 : vector<8x16xf32> to vector<8x16xbf16>
    %c0_22 = arith.constant 0 : index
    %c0_23 = arith.constant 0 : index
    %36 = vector.load %arg9[%c0_22, %c0_23] : memref<16x128xbf16, #tpu.memory_space<vmem>>, vector<16x128xbf16>
    %cst_24 = arith.constant dense<0.000000e+00> : vector<8x128xf32>
    %37 = tpu.matmul %35, %36, %cst_24 {dimension_numbers = #tpu.dot_dimension_numbers<[1], [0], [0], [1], [0, 0, 1, 1], [], []>} : vector<8x16xbf16>, vector<16x128xbf16>, vector<8x128xf32> -> vector<8x128xf32>
    %c0_25 = arith.constant 0 : index
    %c0_26 = arith.constant 0 : index
    %38 = vector.load %arg10[%c0_25, %c0_26] : memref<1x128xf32, #tpu.memory_space<vmem>>, vector<1x128xf32>
    %39 = vector.broadcast %38 : vector<1x128xf32> to vector<8x128xf32>
    %40 = arith.addf %37, %39 : vector<8x128xf32>
    %c0_27 = arith.constant 0 : index
    %c0_28 = arith.constant 0 : index
    %41 = vector.load %arg11[%c0_27, %c0_28] : memref<8x128xf32, #tpu.memory_space<vmem>>, vector<8x128xf32>
    tpu.vector_store %arg11[%c0_27, %c0_28], %40 {strides = array<i32>} : memref<8x128xf32, #tpu.memory_space<vmem>>, vector<8x128xf32>,
    return
  }
  func.func @transform_0(%arg0: i32) -> (i32, i32) {
    %c0_i32 = arith.constant 0 : i32
    %c0_i32_0 = arith.constant 0 : i32
    return %arg0, %c0_i32 : i32, i32
  }
  func.func @transform_1(%arg0: i32) -> (i32, i32) {
    %c0_i32 = arith.constant 0 : i32
    %c0_i32_0 = arith.constant 0 : i32
    %c0_i32_1 = arith.constant 0 : i32
    return %c0_i32, %c0_i32_0 : i32, i32
  }
  func.func @transform_2(%arg0: i32) -> (i32, i32) {
    %c0_i32 = arith.constant 0 : i32
    %c0_i32_0 = arith.constant 0 : i32
    %c0_i32_1 = arith.constant 0 : i32
    return %c0_i32, %c0_i32_0 : i32, i32
  }
  func.func @transform_3(%arg0: i32) -> (i32, i32) {
    %c0_i32 = arith.constant 0 : i32
    %c0_i32_0 = arith.constant 0 : i32
    %c0_i32_1 = arith.constant 0 : i32
    return %c0_i32, %c0_i32_0 : i32, i32
  }
  func.func @transform_4(%arg0: i32) -> (i32, i32) {
    %c0_i32 = arith.constant 0 : i32
    %c0_i32_0 = arith.constant 0 : i32
    %c0_i32_1 = arith.constant 0 : i32
    return %c0_i32, %c0_i32_0 : i32, i32
  }
  func.func @transform_5(%arg0: i32) -> (i32, i32) {
    %c0_i32 = arith.constant 0 : i32
    %c0_i32_0 = arith.constant 0 : i32
    %c0_i32_1 = arith.constant 0 : i32
    return %c0_i32, %c0_i32_0 : i32, i32
  }
  func.func @transform_6(%arg0: i32) -> (i32, i32) {
    %c0_i32 = arith.constant 0 : i32
    %c0_i32_0 = arith.constant 0 : i32
    %c0_i32_1 = arith.constant 0 : i32
    return %c0_i32, %c0_i32_0 : i32, i32
  }
  func.func @transform_7(%arg0: i32) -> (i32, i32) {
    %c0_i32 = arith.constant 0 : i32
    %c0_i32_0 = arith.constant 0 : i32
    %c0_i32_1 = arith.constant 0 : i32
    return %c0_i32, %c0_i32_0 : i32, i32
  }
  func.func @transform_8(%arg0: i32) -> (i32, i32) {
    %c0_i32 = arith.constant 0 : i32
    %c0_i32_0 = arith.constant 0 : i32
    %c0_i32_1 = arith.constant 0 : i32
    return %c0_i32, %c0_i32_0 : i32, i32
  }
  func.func @transform_9(%arg0: i32) -> (i32, i32) {
    %c0_i32 = arith.constant 0 : i32
    %c0_i32_0 = arith.constant 0 : i32
    %c0_i32_1 = arith.constant 0 : i32
    return %c0_i32, %c0_i32_0 : i32, i32
  }
  func.func @transform_10(%arg0: i32) -> (i32, i32) {
    %c0_i32 = arith.constant 0 : i32
    %c0_i32_0 = arith.constant 0 : i32
    return %arg0, %c0_i32 : i32, i32
  }
}

</mosaic_0001>

<llo_original>
// kernel: tpu_custom_call.1
$region0: #{tpu_custom_call.1}
  #allocation0 [shape = 'u32[]', space=smem, size = 0x4, offset = 0x4, fixed_abs, tag = 'smem constant byte address 0x4 - core index']
  #allocation1 [shape = 'u32[144,128]{1,0:T(1,128)}', space=vmem, size = 0x12000, scoped, tag = 'internal scratch']
  %s0 = inlined_call_operand.vmem [shape: bf16[8,32], index: 0, kind: input, shape index: {}]
  %s1 = inlined_call_operand.vmem [shape: bf16[32,16], index: 1, kind: input, shape index: {}]
  %s2 = inlined_call_operand.vmem [shape: f32[1,16], index: 2, kind: input, shape index: {}]
  %s3 = inlined_call_operand.vmem [shape: bf16[16,4], index: 3, kind: input, shape index: {}]
  %s4 = inlined_call_operand.vmem [shape: f32[1,4], index: 4, kind: input, shape index: {}]
  %s5 = inlined_call_operand.vmem [shape: bf16[32,16], index: 5, kind: input, shape index: {}]
  %s6 = inlined_call_operand.vmem [shape: bf16[4,16], index: 6, kind: input, shape index: {}]
  %s7 = inlined_call_operand.vmem [shape: f32[1,16], index: 7, kind: input, shape index: {}]
  %s8 = inlined_call_operand.vmem [shape: bf16[16,128], index: 8, kind: input, shape index: {}]
  %s9 = inlined_call_operand.vmem [shape: f32[1,128], index: 9, kind: input, shape index: {}]
  %s10 = inlined_call_operand.hbm [shape: f32[8,128], index: 10, kind: output, shape index: {}]
  %s11 = sld [smem:[#allocation0]]
  $region50: #{tpu_custom_call.1} parent=0
    _
  %s13 = ssub.s32 1, %s11
  %s14 = scalar_select 0, %s13, %s11
  $region1: #{tpu_custom_call.1} parent=0
    #allocation2 [shape = 'u8[4096]{0}', space=vmem, size = 0x1000, scoped, tag = 'output window, operand 0, single buffered']
    #allocation3 [shape = 's32[1]{0}', space=sflag, size = 0x4, scoped, tag = 'scoped memory for tpu_custom_call.1']
    %15 = vsyncpa [#allocation3], 0
    // Predicated region
    $region2: #{tpu_custom_call.1} parent=1 // pred_check
      _
    $region3: #{tpu_custom_call.1} parent=1 // pred_check_branch
      %17 = sbr.rel (0) target = $region5
    $region4: #{tpu_custom_call.1} parent=1 // pred_region
      _
    $region5: #{tpu_custom_call.1} parent=1 // pred_fallthru
      _
    // Predicated region
    $region6: #{tpu_custom_call.1} parent=1 // pred_check
      _
    $region7: #{tpu_custom_call.1} parent=1 // pred_check_branch
      %19 = sbr.rel (0) target = $region9
    $region8: #{tpu_custom_call.1} parent=1 // pred_region
      _
    $region9: #{tpu_custom_call.1} parent=1 // pred_fallthru
      _
    // Predicated region
    $region10: #{tpu_custom_call.1} parent=1 // pred_check
      _
    $region11: #{tpu_custom_call.1} parent=1 // pred_check_branch
      %21 = sbr.rel (0) target = $region13
    $region12: #{tpu_custom_call.1} parent=1 // pred_region
      _
    $region13: #{tpu_custom_call.1} parent=1 // pred_fallthru
      _
    // Predicated region
    $region14: #{tpu_custom_call.1} parent=1 // pred_check
      _
    $region15: #{tpu_custom_call.1} parent=1 // pred_check_branch
      %23 = sbr.rel (0) target = $region17
    $region16: #{tpu_custom_call.1} parent=1 // pred_region
      _
    $region17: #{tpu_custom_call.1} parent=1 // pred_fallthru
      _
    // Predicated region
    $region18: #{tpu_custom_call.1} parent=1 // pred_check
      _
    $region19: #{tpu_custom_call.1} parent=1 // pred_check_branch
      %25 = sbr.rel (0) target = $region21
    $region20: #{tpu_custom_call.1} parent=1 // pred_region
      _
    $region21: #{tpu_custom_call.1} parent=1 // pred_fallthru
      _
    // Predicated region
    $region22: #{tpu_custom_call.1} parent=1 // pred_check
      _
    $region23: #{tpu_custom_call.1} parent=1 // pred_check_branch
      %27 = sbr.rel (0) target = $region25
    $region24: #{tpu_custom_call.1} parent=1 // pred_region
      _
    $region25: #{tpu_custom_call.1} parent=1 // pred_fallthru
      _
    // Predicated region
    $region26: #{tpu_custom_call.1} parent=1 // pred_check
      _
    $region27: #{tpu_custom_call.1} parent=1 // pred_check_branch
      %29 = sbr.rel (0) target = $region29
    $region28: #{tpu_custom_call.1} parent=1 // pred_region
      _
    $region29: #{tpu_custom_call.1} parent=1 // pred_fallthru
      _
    // Predicated region
    $region30: #{tpu_custom_call.1} parent=1 // pred_check
      _
    $region31: #{tpu_custom_call.1} parent=1 // pred_check_branch
      %31 = sbr.rel (0) target = $region33
    $region32: #{tpu_custom_call.1} parent=1 // pred_region
      _
    $region33: #{tpu_custom_call.1} parent=1 // pred_fallthru
      _
    // Predicated region
    $region34: #{tpu_custom_call.1} parent=1 // pred_check
      _
    $region35: #{tpu_custom_call.1} parent=1 // pred_check_branch
      %33 = sbr.rel (0) target = $region37
    $region36: #{tpu_custom_call.1} parent=1 // pred_region
      _
    $region37: #{tpu_custom_call.1} parent=1 // pred_fallthru
      _
    // Predicated region
    $region38: #{tpu_custom_call.1} parent=1 // pred_check
      _
    $region39: #{tpu_custom_call.1} parent=1 // pred_check_branch
      %35 = sbr.rel (0) target = $region41
    $region40: #{tpu_custom_call.1} parent=1 // pred_region
      _
    $region41: #{tpu_custom_call.1} parent=1 // pred_fallthru
      _
    %v37 = vld [vmem:[%s0] sm:$0xf]
    %v38 = vld [vmem:[%s1] sm:$0xf]
    %v39 = vld [vmem:[%s1 + $0x4] sm:$0xf]
    %v40 = vld [vmem:[%s1 + $0x8] sm:$0xf]
    %v41 = vld [vmem:[%s1 + $0xc] sm:$0xf]
    %v42 = vld [vmem:[%s2] sm:$0x1]
    %v44 = vlaneseq
    %v45 = vshrl.u32 %v44, 7
    %v46 = vsub.s32 0, %v45
    %v47 = vrot.slane %v42, %v46
    %v53 = vunpack.c.l.b16 %v38
    %v54 = vunpack.c.l.b16 %v39
    %v55 = vunpack.c.l.b16 %v40
    %v56 = vunpack.c.l.b16 %v41
    %v57 = vpack.c.b16 %v54, %v53
    %v58 = vpack.c.b16 %v56, %v55
    %vm61 = vcmask 261120
    %v63 = vsel %vm61, %v37, 0
    %65 = vmatprep.subr.bf16.mxu0 0
    %66 = vmatpush1.bf16.msra.mxu0 0
    %67 = vmatprep.subr.bf16.mxu0 0
    %68 = vmatpush1.bf16.msra.mxu0 0
    %69 = vmatprep.subr.bf16.mxu0 0
    %70 = vmatpush1.bf16.msra.mxu0 0
    %71 = vmatprep.subr.bf16.mxu0 0
    %72 = vmatpush1.bf16.msra.mxu0 0
    %73 = vmatprep.subr.bf16.mxu0 0
    %74 = vmatpush1.bf16.msra.mxu0 0
    %75 = vmatprep.subr.bf16.mxu0 0
    %76 = vmatpush1.bf16.msra.mxu0 0
    %77 = vmatprep.subr.bf16.mxu0 0
    %78 = vmatpush1.bf16.msra.mxu0 %v58
    %79 = vmatprep.subr.bf16.mxu0 0
    %80 = vmatpush1.bf16.msra.mxu0 %v57
    %81 = vmatprep.subr.bf16.mxu0 0
    %82 = vmatpush2.bf16.msra.mxu0 0
    %83 = vmatprep.subr.bf16.mxu0 0
    %84 = vmatpush2.bf16.msra.mxu0 0
    %85 = vmatprep.subr.bf16.mxu0 0
    %86 = vmatpush2.bf16.msra.mxu0 0
    %87 = vmatprep.subr.bf16.mxu0 0
    %88 = vmatpush2.bf16.msra.mxu0 0
    %89 = vmatprep.subr.bf16.mxu0 0
    %90 = vmatpush2.bf16.msra.mxu0 0
    %91 = vmatprep.subr.bf16.mxu0 0
    %92 = vmatpush2.bf16.msra.mxu0 0
    %93 = vmatprep.subr.bf16.mxu0 0
    %94 = vmatpush2.bf16.msra.mxu0 0
    %95 = vmatprep.subr.bf16.mxu0 0
    %96 = vmatpush2.bf16.msra.mxu0 0
    %97 = vmatprep.mubr.bf16.mxu0 0
    %98 = vmatmul.mubr.bf16.gmra.mxu0 %v63
    %v99 = vpop.f32.mrf.mxu0
    %v100 = vadd.f32 %v47, %v99
    %v101 = vpop.f32.mrf.mxu0
    %v102 = vpop.f32.mrf.mxu0
    %v103 = vpop.f32.mrf.mxu0
    %104 = vdwg.mxu0
    %v105 = vmax.f32 %v100, 0.0
    %v106 = vpack.c.bf16 %v105, %v105
    %v107 = vld [vmem:[%s3] sm:$0xf]
    %v108 = vld [vmem:[%s3 + $0x4] sm:$0xf]
    %v109 = vld [vmem:[%s4] sm:$0x1]
    %v111 = vlaneseq
    %v112 = vshrl.u32 %v111, 7
    %v113 = vsub.s32 0, %v112
    %v114 = vrot.slane %v109, %v113
    %v118 = vunpack.c.l.b16 %v107
    %v119 = vunpack.c.l.b16 %v108
    %v120 = vpack.c.b16 %v119, %v118
    %vm122 = vcmask 130048
    %v124 = vsel %vm122, %v106, 0
    %126 = vmatprep.subr.bf16.mxu0 0
    %127 = vmatpush1.bf16.msra.mxu0 0
    %128 = vmatprep.subr.bf16.mxu0 0
    %129 = vmatpush1.bf16.msra.mxu0 0
    %130 = vmatprep.subr.bf16.mxu0 0
    %131 = vmatpush1.bf16.msra.mxu0 0
    %132 = vmatprep.subr.bf16.mxu0 0
    %133 = vmatpush1.bf16.msra.mxu0 0
    %134 = vmatprep.subr.bf16.mxu0 0
    %135 = vmatpush1.bf16.msra.mxu0 0
    %136 = vmatprep.subr.bf16.mxu0 0
    %137 = vmatpush1.bf16.msra.mxu0 0
    %138 = vmatprep.subr.bf16.mxu0 0
    %139 = vmatpush1.bf16.msra.mxu0 0
    %140 = vmatprep.subr.bf16.mxu0 0
    %141 = vmatpush1.bf16.msra.mxu0 %v120
    %142 = vmatprep.subr.bf16.mxu0 0
    %143 = vmatpush2.bf16.msra.mxu0 0
    %144 = vmatprep.subr.bf16.mxu0 0
    %145 = vmatpush2.bf16.msra.mxu0 0
    %146 = vmatprep.subr.bf16.mxu0 0
    %147 = vmatpush2.bf16.msra.mxu0 0
    %148 = vmatprep.subr.bf16.mxu0 0
    %149 = vmatpush2.bf16.msra.mxu0 0
    %150 = vmatprep.subr.bf16.mxu0 0
    %151 = vmatpush2.bf16.msra.mxu0 0
    %152 = vmatprep.subr.bf16.mxu0 0
    %153 = vmatpush2.bf16.msra.mxu0 0
    %154 = vmatprep.subr.bf16.mxu0 0
    %155 = vmatpush2.bf16.msra.mxu0 0
    %156 = vmatprep.subr.bf16.mxu0 0
    %157 = vmatpush2.bf16.msra.mxu0 0
    %158 = vmatprep.mubr.bf16.mxu0 0
    %159 = vmatmul.mubr.bf16.gmra.mxu0 %v124
    %v160 = vpop.f32.mrf.mxu0
    %v161 = vadd.f32 %v114, %v160
    %v162 = vpop.f32.mrf.mxu0
    %v163 = vpop.f32.mrf.mxu0
    %v164 = vpop.f32.mrf.mxu0
    %165 = vdwg.mxu0
    %vm166 = vcmask 31744
    %v167 = vsel %vm166, %v161, -inf
    %168 = vmax.xlane.f32.xlu0 %v167
    %v169 = vpop.xlane.xlu0 %168
    %v170 = vsub.f32 %v161, %v169
    %v171 = vmul.f32 %v170, 1.442695
    %v172 = vpow.pop %v171
    %v173 = vsel %vm166, %v172, 0.0
    %174 = vadd.xlane.f32.xlu0 %v173
    %v175 = vpop.xlane.xlu0 %174
    %v176 = vrcp.pop %v175
    %v177 = vmul.f32 %v172, %v176
    %v178 = vld [vmem:[%s5] sm:$0xf]
    %v179 = vld [vmem:[%s5 + $0x4] sm:$0xf]
    %v180 = vld [vmem:[%s5 + $0x8] sm:$0xf]
    %v181 = vld [vmem:[%s5 + $0xc] sm:$0xf]
    %v182 = vpack.c.bf16 %v177, %v177
    %v183 = vld [vmem:[%s6] sm:$0x3]
    %v185 = vsel %vm166, %v182, 0
    %vm187 = vcmask 1041408
    %v189 = vsel %vm187, %v183, 0
    %191 = vmatprep.subr.bf16.mxu0 0
    %192 = vmatpush1.bf16.msra.mxu0 0
    %193 = vmatprep.subr.bf16.mxu0 0
    %194 = vmatpush1.bf16.msra.mxu0 0
    %195 = vmatprep.subr.bf16.mxu0 0
    %196 = vmatpush1.bf16.msra.mxu0 0
    %197 = vmatprep.subr.bf16.mxu0 0
    %198 = vmatpush1.bf16.msra.mxu0 0
    %199 = vmatprep.subr.bf16.mxu0 0
    %200 = vmatpush1.bf16.msra.mxu0 0
    %201 = vmatprep.subr.bf16.mxu0 0
    %202 = vmatpush1.bf16.msra.mxu0 0
    %203 = vmatprep.subr.bf16.mxu0 0
    %204 = vmatpush1.bf16.msra.mxu0 0
    %205 = vmatprep.subr.bf16.mxu0 0
    %206 = vmatpush1.bf16.msra.mxu0 %v189
    %207 = vmatprep.subr.bf16.mxu0 0
    %208 = vmatpush2.bf16.msra.mxu0 0
    %209 = vmatprep.subr.bf16.mxu0 0
    %210 = vmatpush2.bf16.msra.mxu0 0
    %211 = vmatprep.subr.bf16.mxu0 0
    %212 = vmatpush2.bf16.msra.mxu0 0
    %213 = vmatprep.subr.bf16.mxu0 0
    %214 = vmatpush2.bf16.msra.mxu0 0
    %215 = vmatprep.subr.bf16.mxu0 0
    %216 = vmatpush2.bf16.msra.mxu0 0
    %217 = vmatprep.subr.bf16.mxu0 0
    %218 = vmatpush2.bf16.msra.mxu0 0
    %219 = vmatprep.subr.bf16.mxu0 0
    %220 = vmatpush2.bf16.msra.mxu0 0
    %221 = vmatprep.subr.bf16.mxu0 0
    %222 = vmatpush2.bf16.msra.mxu0 0
    %223 = vmatprep.mubr.bf16.mxu0 0
    %224 = vmatmul.mubr.bf16.gmra.mxu0 %v185
    %v225 = vpop.f32.mrf.mxu0
    %v226 = vadd.f32 0.0, %v225
    %v227 = vpop.f32.mrf.mxu0
    %v228 = vpop.f32.mrf.mxu0
    %v229 = vpop.f32.mrf.mxu0
    %230 = vdwg.mxu0
    %v235 = vunpack.c.l.b16 %v178
    %v236 = vunpack.c.l.b16 %v179
    %v237 = vunpack.c.l.b16 %v180
    %v238 = vunpack.c.l.b16 %v181
    %v239 = vpack.c.b16 %v236, %v235
    %v240 = vpack.c.b16 %v238, %v237
    %243 = vmatprep.subr.bf16.mxu0 0
    %244 = vmatpush1.bf16.msra.mxu0 0
    %245 = vmatprep.subr.bf16.mxu0 0
    %246 = vmatpush1.bf16.msra.mxu0 0
    %247 = vmatprep.subr.bf16.mxu0 0
    %248 = vmatpush1.bf16.msra.mxu0 0
    %249 = vmatprep.subr.bf16.mxu0 0
    %250 = vmatpush1.bf16.msra.mxu0 0
    %251 = vmatprep.subr.bf16.mxu0 0
    %252 = vmatpush1.bf16.msra.mxu0 0
    %253 = vmatprep.subr.bf16.mxu0 0
    %254 = vmatpush1.bf16.msra.mxu0 0
    %255 = vmatprep.subr.bf16.mxu0 0
    %256 = vmatpush1.bf16.msra.mxu0 %v240
    %257 = vmatprep.subr.bf16.mxu0 0
    %258 = vmatpush1.bf16.msra.mxu0 %v239
    %259 = vmatprep.subr.bf16.mxu0 0
    %260 = vmatpush2.bf16.msra.mxu0 0
    %261 = vmatprep.subr.bf16.mxu0 0
    %262 = vmatpush2.bf16.msra.mxu0 0
    %263 = vmatprep.subr.bf16.mxu0 0
    %264 = vmatpush2.bf16.msra.mxu0 0
    %265 = vmatprep.subr.bf16.mxu0 0
    %266 = vmatpush2.bf16.msra.mxu0 0
    %267 = vmatprep.subr.bf16.mxu0 0
    %268 = vmatpush2.bf16.msra.mxu0 0
    %269 = vmatprep.subr.bf16.mxu0 0
    %270 = vmatpush2.bf16.msra.mxu0 0
    %271 = vmatprep.subr.bf16.mxu0 0
    %272 = vmatpush2.bf16.msra.mxu0 0
    %273 = vmatprep.subr.bf16.mxu0 0
    %274 = vmatpush2.bf16.msra.mxu0 0
    %275 = vmatprep.mubr.bf16.mxu0 0
    %276 = vmatmul.mubr.bf16.gmra.mxu0 %v63
    %v277 = vpop.f32.mrf.mxu0
    %v278 = vadd.f32 %v226, %v277
    %v279 = vpop.f32.mrf.mxu0
    %v280 = vpop.f32.mrf.mxu0
    %v281 = vpop.f32.mrf.mxu0
    %282 = vdwg.mxu0
    %v283 = vld [vmem:[%s7] sm:$0x1]
    %v285 = vlaneseq
    %v286 = vshrl.u32 %v285, 7
    %v287 = vsub.s32 0, %v286
    %v288 = vrot.slane %v283, %v287
    %v290 = vadd.f32 %v278, %v288
    %v291 = vmax.f32 %v290, 0.0
    %v292 = vpack.c.bf16 %v291, %v291
    %v293 = vld [vmem:[%s8] sm:$0xf]
    %v294 = vld [vmem:[%s8 + $0x4] sm:$0xf]
    %v295 = vld [vmem:[%s9] sm:$0x1]
    %v297 = vlaneseq
    %v298 = vshrl.u32 %v297, 7
    %v299 = vsub.s32 0, %v298
    %v300 = vrot.slane %v295, %v299
    %v304 = vunpack.c.l.b16 %v293
    %v305 = vunpack.c.l.b16 %v294
    %v306 = vpack.c.b16 %v305, %v304
    %v309 = vsel %vm122, %v292, 0
    %311 = vmatprep.subr.bf16.mxu0 0
    %312 = vmatpush1.bf16.msra.mxu0 0
    %313 = vmatprep.subr.bf16.mxu0 0
    %314 = vmatpush1.bf16.msra.mxu0 0
    %315 = vmatprep.subr.bf16.mxu0 0
    %316 = vmatpush1.bf16.msra.mxu0 0
    %317 = vmatprep.subr.bf16.mxu0 0
    %318 = vmatpush1.bf16.msra.mxu0 0
    %319 = vmatprep.subr.bf16.mxu0 0
    %320 = vmatpush1.bf16.msra.mxu0 0
    %321 = vmatprep.subr.bf16.mxu0 0
    %322 = vmatpush1.bf16.msra.mxu0 0
    %323 = vmatprep.subr.bf16.mxu0 0
    %324 = vmatpush1.bf16.msra.mxu0 0
    %325 = vmatprep.subr.bf16.mxu0 0
    %326 = vmatpush1.bf16.msra.mxu0 %v306
    %327 = vmatprep.subr.bf16.mxu0 0
    %328 = vmatpush2.bf16.msra.mxu0 0
    %329 = vmatprep.subr.bf16.mxu0 0
    %330 = vmatpush2.bf16.msra.mxu0 0
    %331 = vmatprep.subr.bf16.mxu0 0
    %332 = vmatpush2.bf16.msra.mxu0 0
    %333 = vmatprep.subr.bf16.mxu0 0
    %334 = vmatpush2.bf16.msra.mxu0 0
    %335 = vmatprep.subr.bf16.mxu0 0
    %336 = vmatpush2.bf16.msra.mxu0 0
    %337 = vmatprep.subr.bf16.mxu0 0
    %338 = vmatpush2.bf16.msra.mxu0 0
    %339 = vmatprep.subr.bf16.mxu0 0
    %340 = vmatpush2.bf16.msra.mxu0 0
    %341 = vmatprep.subr.bf16.mxu0 0
    %342 = vmatpush2.bf16.msra.mxu0 0
    %343 = vmatprep.mubr.bf16.mxu0 0
    %344 = vmatmul.mubr.bf16.gmra.mxu0 %v309
    %v345 = vpop.f32.mrf.mxu0
    %v346 = vadd.f32 %v300, %v345
    %v347 = vpop.f32.mrf.mxu0
    %v348 = vpop.f32.mrf.mxu0
    %v349 = vpop.f32.mrf.mxu0
    %350 = vdwg.mxu0
    %351 = vst [vmem:[#allocation2] sm:$0xff] %v346
    // Predicated region
    $region42: #{tpu_custom_call.1} parent=1 // pred_check
      _
    $region43: #{tpu_custom_call.1} parent=1 // pred_check_branch
      %353 = sbr.rel (0) target = $region45
    $region44: #{tpu_custom_call.1} parent=1 // pred_region
      %s355 = ssub.s32 128, 128
      %356 = vsyncadd [#allocation3], %s355
      %s358 = sshll.u32 [#allocation2], 4
      %s359 = int_to_ptr.vmem [resolvable:$true] %s358
      %361 = dma.vmem_to_hbm [thread:$0]  %s359, 128, %s10, [#allocation3]
    $region45: #{tpu_custom_call.1} parent=1 // pred_fallthru
      _
    // Predicated region
    $region46: #{tpu_custom_call.1} parent=1 // pred_check
      _
    $region47: #{tpu_custom_call.1} parent=1 // pred_check_branch
      %363 = sbr.rel (0) target = $region49
    $region48: #{tpu_custom_call.1} parent=1 // pred_region
      %364 = dma.done [#allocation3], 128
    $region49: #{tpu_custom_call.1} parent=1 // pred_fallthru
      _
    %365 = vsyncpa [#allocation3], 1

</llo_original>
